<compile_context>
chip_gen: v5e
topology: v5e:2x2
jax: 0.10.0
libtpu: 0.0.40
codegen_flags: <defaults>
</compile_context>

<pallas_src>
import math
import functools

import jax
import jax.numpy as jnp
from jax.experimental import pallas as pl
from jax.experimental.pallas import tpu as pltpu


def _uda_loss_kernel(thr_ref, labels_ref, y_pred_ref, loss_sup_ref, loss_unsup_ref,
                     *, sup_size, unsup_size, num_labels, use_tsa):
    n_total = sup_size + 2 * unsup_size

    # Load once in native dtype, upcast to f32 (v5e has no bf16 VPU/EUP).
    yp = y_pred_ref[...].astype(jnp.float32)            # [N, C]

    # ---- single shared softmax-statistics pass over the whole block ----
    m = jnp.max(yp, axis=-1, keepdims=True)              # [N, 1]
    z = yp - m                                           # [N, C]
    e = jnp.exp(z)                                       # [N, C]  (only block-sized EUP pass)
    s = jnp.sum(e, axis=-1, keepdims=True)               # [N, 1]
    log_s = jnp.log(s)                                   # [N, 1]
    inv_s = 1.0 / s                                      # [N, 1]  N divides instead of N*C
    logp = z - log_s                                     # [N, C]  log-softmax
    p = e * inv_s                                        # [N, C]  softmax

    # ---- supervised branch: cross entropy with optional TSA row selection ----
    # labels_ref is [N, 1] int32, padded with -1 outside the supervised rows, so the
    # one-hot / CE math runs on full, sublane-aligned vregs with no row slicing.
    labels = labels_ref[...]                                               # [N, 1]
    class_iota = jax.lax.broadcasted_iota(jnp.int32, (n_total, num_labels), 1)
    onehot = (class_iota == labels).astype(jnp.float32)                    # [N, C]

    ce_rows = -jnp.sum(onehot * logp, axis=-1, keepdims=True)              # [N, 1]
    row_iota = jax.lax.broadcasted_iota(jnp.int32, (n_total, 1), 0)        # [N, 1]
    sup_mask = (row_iota < sup_size).astype(jnp.float32)                   # [N, 1]

    if not use_tsa:
        # nn.CrossEntropyLoss default: mean over supervised batch.
        loss_sup = jnp.sum(ce_rows) * jnp.float32(1.0 / sup_size)
    else:
        thr = thr_ref[0, 0]                                                # runtime scalar
        p_true = jnp.sum(onehot * p, axis=-1, keepdims=True)               # [N, 1]
        sel = jnp.where(p_true < thr, sup_mask, jnp.float32(0.0))          # [N, 1]
        cnt = jnp.sum(sel)
        masked_sum = jnp.sum(sel * ce_rows)
        loss_sup = jnp.where(cnt > 0.0, masked_sum / jnp.maximum(cnt, 1.0),
                             jnp.float32(0.0))

    # ---- unsupervised branch: KLDiv(log_softmax(pred) || softmax(true)), batchmean ----
    p_t = p[sup_size:sup_size + unsup_size]                                # [U, C]
    logp_t = logp[sup_size:sup_size + unsup_size]                          # [U, C]
    logq = logp[sup_size + unsup_size:]                                    # [U, C]
    kl = jnp.sum(p_t * (logp_t - logq)) * jnp.float32(1.0 / unsup_size)

    loss_sup_ref[0, 0] = loss_sup
    loss_unsup_ref[0, 0] = kl


class UDALoss:
    """JAX/Pallas port of bert4torch UDALoss (forward semantics only)."""

    def __init__(self, tsa_schedule=None, start_p=0.0, end_p=1.0, return_all_loss=True):
        if tsa_schedule:
            assert tsa_schedule in {'linear_schedule', 'exp_schedule', 'log_schedule'}, \
                'tsa_schedule config illegal'
        self.tsa_schedule = tsa_schedule
        self.start = start_p
        self.end = end_p
        self.return_all_loss = return_all_loss

    @staticmethod
    def get_tsa_threshold(schedule, global_step, num_train_steps, start, end):
        training_progress = global_step / num_train_steps
        if schedule == 'linear_schedule':
            threshold = training_progress
        elif schedule == 'exp_schedule':
            threshold = math.exp((training_progress - 1) * 5)
        elif schedule == 'log_schedule':
            threshold = 1 - math.exp(-training_progress * 5)
        return threshold * (end - start) + start

    def __call__(self, y_pred, y_true_sup, global_step, total_steps):
        sup_size = int(y_true_sup.shape[0])
        n_total = int(y_pred.shape[0])
        unsup_size = (n_total - sup_size) // 2
        num_labels = int(y_pred.shape[1])

        use_tsa = self.tsa_schedule is not None
        if use_tsa:
            thr_val = self.get_tsa_threshold(self.tsa_schedule, global_step,
                                             total_steps, self.start, self.end)
        else:
            thr_val = 0.0
        # Runtime scalar -> changing global_step does NOT trigger a recompile.
        thr = jnp.asarray(thr_val, dtype=jnp.float32).reshape(1, 1)

        # Labels padded to [N, 1] with -1 (never matches any class) so the supervised
        # branch runs mask-based on full aligned blocks.
        labels_full = jnp.full((n_total, 1), -1, dtype=jnp.int32)
        labels_full = labels_full.at[:sup_size, 0].set(y_true_sup.astype(jnp.int32))

        kernel = functools.partial(
            _uda_loss_kernel,
            sup_size=sup_size, unsup_size=unsup_size,
            num_labels=num_labels, use_tsa=use_tsa)

        elem_bytes = jnp.dtype(y_pred.dtype).itemsize
        cost = pl.CostEstimate(
            flops=8 * n_total * num_labels,
            transcendentals=n_total * num_labels + 2 * n_total,
            bytes_accessed=n_total * num_labels * elem_bytes + n_total * 4 + 3 * 4)

        # Headroom for the f32 working set; never below the default scoped limit.
        vmem_bytes = int(min(100 * 2**20,
                             max(32 * 2**20, 12 * n_total * num_labels * 4)))

        loss_sup, loss_unsup = pl.pallas_call(
            kernel,
            out_shape=(jax.ShapeDtypeStruct((1, 1), jnp.float32),
                       jax.ShapeDtypeStruct((1, 1), jnp.float32)),
            in_specs=[
                pl.BlockSpec(memory_space=pltpu.MemorySpace.SMEM),   # threshold scalar
                pl.BlockSpec(memory_space=pltpu.MemorySpace.VMEM),   # labels [N,1] int32
                pl.BlockSpec(memory_space=pltpu.MemorySpace.VMEM),   # y_pred [N,C] native dtype
            ],
            out_specs=(
                pl.BlockSpec(memory_space=pltpu.MemorySpace.SMEM),
                pl.BlockSpec(memory_space=pltpu.MemorySpace.SMEM),
            ),
            compiler_params=pltpu.CompilerParams(vmem_limit_bytes=vmem_bytes),
            cost_estimate=cost,
        )(thr, labels_full, y_pred)

        loss_sup = loss_sup[0, 0]
        loss_unsup = loss_unsup[0, 0]
        total = loss_sup + loss_unsup
        if self.return_all_loss:
            return total, loss_sup, loss_unsup
        return total


def _reference(y_pred, y_true_sup, tsa_schedule, global_step, total_steps,
               start=0.0, end=1.0):
    """Pure-JAX reference mirroring the PyTorch module, for a sanity check."""
    y_pred = y_pred.astype(jnp.float32)
    sup_size = y_true_sup.shape[0]
    unsup_size = (y_pred.shape[0] - sup_size) // 2
    y_pred_sup = y_pred[:sup_size]
    logp = jax.nn.log_softmax(y_pred_sup, axis=-1)
    ce_rows = -jnp.take_along_axis(logp, y_true_sup[:, None], axis=1)[:, 0]
    if tsa_schedule is None:
        loss_sup = jnp.mean(ce_rows)
    else:
        thr = UDALoss.get_tsa_threshold(tsa_schedule, global_step, total_steps, start, end)
        p_true = jnp.take_along_axis(jax.nn.softmax(y_pred_sup, axis=-1),
                                     y_true_sup[:, None], axis=1)[:, 0]
        sel = p_true < thr
        cnt = jnp.sum(sel)
        loss_sup = jnp.where(cnt > 0, jnp.sum(jnp.where(sel, ce_rows, 0.0)) /
                             jnp.maximum(cnt, 1), 0.0)
    t = jax.nn.softmax(y_pred[sup_size:sup_size + unsup_size], axis=-1)
    lq = jax.nn.log_softmax(y_pred[sup_size + unsup_size:], axis=-1)
    loss_unsup = jnp.sum(t * (jnp.log(t) - lq)) / unsup_size
    return loss_sup + loss_unsup, loss_sup, loss_unsup


if __name__ == "__main__":
    key = jax.random.PRNGKey(0)
    btz_sup, btz_unsup, num_labels = 4, 4, 16
    n_total = btz_sup + 2 * btz_unsup

    k1, k2 = jax.random.split(key)
    y_pred_f32 = jax.random.normal(k1, (n_total, num_labels), dtype=jnp.float32)
    y_true_sup = jax.random.randint(k2, (btz_sup,), 0, num_labels, dtype=jnp.int32)

    total_steps = 10
    ok = True

    # f32 input, all schedules, two different global steps (runtime threshold).
    for sched in [None, 'linear_schedule', 'exp_schedule', 'log_schedule']:
        loss_fn = UDALoss(tsa_schedule=sched, return_all_loss=True)
        for global_step in (3, 7):
            total, l_sup, l_unsup = loss_fn(y_pred_f32, y_true_sup, global_step, total_steps)
            jax.block_until_ready((total, l_sup, l_unsup))
            ref_total, ref_sup, ref_unsup = _reference(
                y_pred_f32, y_true_sup, sched, global_step, total_steps)
            ok &= bool(jnp.allclose(total, ref_total, atol=1e-5, rtol=1e-5))
            ok &= bool(jnp.allclose(l_sup, ref_sup, atol=1e-5, rtol=1e-5))
            ok &= bool(jnp.allclose(l_unsup, ref_unsup, atol=1e-5, rtol=1e-5))

    # bf16 input (native dtype path, no wrapper cast); reference on the same bf16 values.
    y_pred_bf16 = y_red = y_pred_f32.astype(jnp.bfloat16)
    loss_fn = UDALoss(tsa_schedule='linear_schedule', return_all_loss=True)
    total, l_sup, l_unsup = loss_fn(y_pred_bf16, y_true_sup, 3, total_steps)
    jax.block_until_ready((total, l_sup, l_unsup))
    ref_total, ref_sup, ref_unsup = _reference(
        y_pred_bf16, y_true_sup, 'linear_schedule', 3, total_steps)
    ok &= bool(jnp.allclose(total, ref_total, atol=1e-3, rtol=1e-3))
    ok &= bool(jnp.allclose(l_sup, ref_sup, atol=1e-3, rtol=1e-3))
    ok &= bool(jnp.allclose(l_unsup, ref_unsup, atol=1e-3, rtol=1e-3))

    if ok:
        print("KERNEL_OK")
    else:
        print("KERNEL_MISMATCH")
</pallas_src>

<mosaic_0001>
module attributes {stable_mosaic.version = 11 : i64} {
  func.func @_uda_loss_kernel(%arg0: memref<1x1xf32, #tpu.memory_space<smem>>, %arg1: memref<12x1xi32, #tpu.memory_space<vmem>>, %arg2: memref<12x16xf32, #tpu.memory_space<vmem>>, %arg3: memref<1x1xf32, #tpu.memory_space<smem>>, %arg4: memref<1x1xf32, #tpu.memory_space<smem>>) attributes {dimension_semantics = [], scalar_prefetch = 0 : i64, scratch_operands = 0 : i64, tpu.core_type = #tpu.core_type<tc>} {
    %c0 = arith.constant 0 : index
    %c0_0 = arith.constant 0 : index
    %0 = vector.load %arg2[%c0, %c0_0] : memref<12x16xf32, #tpu.memory_space<vmem>>, vector<12x16xf32>
    %cst = arith.constant dense<0xFF800000> : vector<12xf32>
    %1 = vector.multi_reduction <maximumf>, %0, %cst [1] : vector<12x16xf32> to vector<12xf32>
    %2 = vector.shape_cast %1 : vector<12xf32> to vector<12x1xf32>
    %3 = vector.broadcast %2 : vector<12x1xf32> to vector<12x16xf32>
    %4 = arith.subf %0, %3 : vector<12x16xf32>
    %5 = math.exp %4 : vector<12x16xf32>
    %cst_1 = arith.constant dense<0.000000e+00> : vector<12xf32>
    %6 = vector.multi_reduction <add>, %5, %cst_1 [1] : vector<12x16xf32> to vector<12xf32>
    %7 = vector.shape_cast %6 : vector<12xf32> to vector<12x1xf32>
    %8 = math.log %7 : vector<12x1xf32>
    %cst_2 = arith.constant 1.000000e+00 : f32
    %9 = vector.broadcast %cst_2 : f32 to vector<12x1xf32>
    %10 = arith.divf %9, %7 : vector<12x1xf32>
    %11 = vector.broadcast %8 : vector<12x1xf32> to vector<12x16xf32>
    %12 = arith.subf %4, %11 : vector<12x16xf32>
    %13 = vector.broadcast %10 : vector<12x1xf32> to vector<12x16xf32>
    %14 = arith.mulf %5, %13 : vector<12x16xf32>
    %c0_3 = arith.constant 0 : index
    %c0_4 = arith.constant 0 : index
    %15 = vector.load %arg1[%c0_3, %c0_4] : memref<12x1xi32, #tpu.memory_space<vmem>>, vector<12x1xi32>
    %16 = tpu.iota {dimensions = array<i32: 1>} : vector<12x16xi32>
    %17 = vector.broadcast %15 : vector<12x1xi32> to vector<12x16xi32>
    %18 = arith.cmpi eq, %16, %17 : vector<12x16xi32>
    %19 = arith.extui %18 : vector<12x16xi1> to vector<12x16xi32>
    %20 = arith.sitofp %19 : vector<12x16xi32> to vector<12x16xf32>
    %21 = arith.mulf %20, %12 : vector<12x16xf32>
    %cst_5 = arith.constant dense<0.000000e+00> : vector<12xf32>
    %22 = vector.multi_reduction <add>, %21, %cst_5 [1] : vector<12x16xf32> to vector<12xf32>
    %23 = vector.shape_cast %22 : vector<12xf32> to vector<12x1xf32>
    %cst_6 = arith.constant 0.000000e+00 : f32
    %24 = vector.broadcast %cst_6 : f32 to vector<12x1xf32>
    %25 = arith.subf %24, %23 : vector<12x1xf32>
    %26 = vector.shape_cast %25 : vector<12x1xf32> to vector<1x12x1xf32>
    %cst_7 = arith.constant dense<0.000000e+00> : vector<1xf32>
    %27 = vector.multi_reduction <add>, %26, %cst_7 [1, 2] : vector<1x12x1xf32> to vector<1xf32>
    %28 = vector.shape_cast %27 : vector<1xf32> to vector<1x1x1xf32>
    %29 = vector.extract %28[0, 0, 0] : f32 from vector<1x1x1xf32>
    %cst_8 = arith.constant 2.500000e-01 : f32
    %30 = arith.mulf %29, %cst_8 : f32
    %31 = vector.extract_strided_slice %14 {offsets = [4, 0], sizes = [4, 16], strides = [1, 1]} : vector<12x16xf32> to vector<4x16xf32>
    %32 = vector.extract_strided_slice %12 {offsets = [4, 0], sizes = [4, 16], strides = [1, 1]} : vector<12x16xf32> to vector<4x16xf32>
    %33 = vector.extract_strided_slice %12 {offsets = [8, 0], sizes = [4, 16], strides = [1, 1]} : vector<12x16xf32> to vector<4x16xf32>
    %34 = arith.subf %32, %33 : vector<4x16xf32>
    %35 = arith.mulf %31, %34 : vector<4x16xf32>
    %36 = vector.shape_cast %35 : vector<4x16xf32> to vector<1x4x16xf32>
    %cst_9 = arith.constant dense<0.000000e+00> : vector<1xf32>
    %37 = vector.multi_reduction <add>, %36, %cst_9 [1, 2] : vector<1x4x16xf32> to vector<1xf32>
    %38 = vector.shape_cast %37 : vector<1xf32> to vector<1x1x1xf32>
    %39 = vector.extract %38[0, 0, 0] : f32 from vector<1x1x1xf32>
    %cst_10 = arith.constant 2.500000e-01 : f32
    %40 = arith.mulf %39, %cst_10 : f32
    %c0_11 = arith.constant 0 : index
    %c0_12 = arith.constant 0 : index
    %41 = memref.load %arg3[%c0_11, %c0_12] : memref<1x1xf32, #tpu.memory_space<smem>>
    memref.store %30, %arg3[%c0_11, %c0_12] : memref<1x1xf32, #tpu.memory_space<smem>>
    %c0_13 = arith.constant 0 : index
    %c0_14 = arith.constant 0 : index
    %42 = memref.load %arg4[%c0_13, %c0_14] : memref<1x1xf32, #tpu.memory_space<smem>>
    memref.store %40, %arg4[%c0_13, %c0_14] : memref<1x1xf32, #tpu.memory_space<smem>>
    return
  }
}

</mosaic_0001>

<llo_original>
// kernel: tpu_custom_call.1
$region0: #{tpu_custom_call.1}
  #allocation0 [shape = 'u32[]', space=smem, size = 0x4, offset = 0x4, fixed_abs, tag = 'smem constant byte address 0x4 - core index']
  #allocation1 [shape = 'u32[72,128]{1,0:T(1,128)}', space=vmem, size = 0x9000, scoped, tag = 'internal scratch']
  #allocation2 [shape = 'f32[1,1]{1,0:T(1,128)S(6)}', space=smem, size = 0x200, scoped, tag = 'scoped memory for tpu_custom_call.1']
  %s0 = inlined_call_operand.<no memory space> [shape: f32[1,1], index: 0, kind: input, shape index: {}]
  %s1 = inlined_call_operand.vmem [shape: s32[12,1], index: 1, kind: input, shape index: {}]
  %s2 = inlined_call_operand.vmem [shape: f32[12,16], index: 2, kind: input, shape index: {}]
  %s3 = inlined_call_operand.hbm [shape: f32[1,1], index: 3, kind: output, shape index: {0}]
  %s4 = inlined_call_operand.hbm [shape: f32[1,1], index: 4, kind: output, shape index: {1}]
  %5 = xla_tuple %s3, %s4
  %s6 = sld [smem:[#allocation0]]
  $region30: #{tpu_custom_call.1} parent=0
    _
  %s8 = ssub.s32 1, %s6
  %s9 = scalar_select 0, %s8, %s6
  %10 = sst [smem:[#allocation2]] %s0
  $region1: #{tpu_custom_call.1} parent=0
    #allocation3 [shape = 'u8[512]{0}', space=smem, size = 0x200, scoped, tag = 'output window, operand 0, single buffered']
    #allocation4 [shape = 's32[1]{0}', space=sflag, size = 0x4, scoped, tag = 'scoped memory for tpu_custom_call.1']
    #allocation5 [shape = 'u8[512]{0}', space=smem, size = 0x200, scoped, tag = 'output window, operand 1, single buffered']
    #allocation6 [shape = 's32[1]{0}', space=sflag, size = 0x4, scoped, tag = 'scoped memory for tpu_custom_call.1']
    %11 = vsyncpa [#allocation4], 0
    %12 = vsyncpa [#allocation6], 0
    // Predicated region
    $region2: #{tpu_custom_call.1} parent=1 // pred_check
      _
    $region3: #{tpu_custom_call.1} parent=1 // pred_check_branch
      %14 = sbr.rel (0) target = $region5
    $region4: #{tpu_custom_call.1} parent=1 // pred_region
      _
    $region5: #{tpu_custom_call.1} parent=1 // pred_fallthru
      _
    // Predicated region
    $region6: #{tpu_custom_call.1} parent=1 // pred_check
      _
    $region7: #{tpu_custom_call.1} parent=1 // pred_check_branch
      %16 = sbr.rel (0) target = $region9
    $region8: #{tpu_custom_call.1} parent=1 // pred_region
      _
    $region9: #{tpu_custom_call.1} parent=1 // pred_fallthru
      _
    // Predicated region
    $region10: #{tpu_custom_call.1} parent=1 // pred_check
      _
    $region11: #{tpu_custom_call.1} parent=1 // pred_check_branch
      %18 = sbr.rel (0) target = $region13
    $region12: #{tpu_custom_call.1} parent=1 // pred_region
      _
    $region13: #{tpu_custom_call.1} parent=1 // pred_fallthru
      _
    %v19 = vld [vmem:[%s2] sm:$0xff]
    %v20 = vld [vmem:[%s2 + $0x8] sm:$0xf]
    %vm21 = vcmask 130048
    %v22 = vsel %vm21, %v19, -inf
    %23 = vmax.xlane.f32.xlu0 %v22
    %v24 = vpop.xlane.xlu0 %23
    %vm25 = vcmask 125952
    %v26 = vsel %vm25, %v20, -inf
    %27 = vmax.xlane.f32.xlu0 %v26
    %v28 = vpop.xlane.xlu0 %27
    %v29 = vsub.f32 %v19, %v24
    %v30 = vsub.f32 %v20, %v28
    %v31 = vmul.f32 %v29, 1.442695
    %v32 = vpow.pop %v31
    %v33 = vmul.f32 %v30, 1.442695
    %v34 = vpow.pop %v33
    %v35 = vsel %vm21, %v32, 0.0
    %36 = vadd.xlane.f32.xlu0 %v35
    %v37 = vpop.xlane.xlu0 %36
    %v38 = vsel %vm25, %v34, 0.0
    %39 = vadd.xlane.f32.xlu0 %v38
    %v40 = vpop.xlane.xlu0 %39
    %v41 = vlog2.pop %v37
    %v42 = vmul.f32 %v41, 0.6931472
    %v43 = vlog2.pop %v40
    %v44 = vmul.f32 %v43, 0.6931472
    %v45 = vrcp.pop %v37
    %v46 = vmul.f32 %v37, %v45
    %v47 = vsub.f32 1.0, %v46
    %v48 = vmul.f32 %v45, %v47
    %v49 = vadd.f32 %v45, %v48
    %vm50 = vweird.f32 %v37
    %vm51 = vweird.f32 %v45
    %vm52 = vmor %vm50, %vm51
    %v53 = vsel %vm52, %v45, %v49
    %v54 = vand.u32 2147483647, %v37
    %vm55 = vcmp.eq.f32.partialorder %v54, 8.507059e+37
    %v56 = vand.u32 %v37, 2147483648
    %v57 = vor.u32 1.1754944e-38, %v56
    %v58 = vsel %vm55, %v57, %v53
    %v59 = vmul.f32 1.0, %v58
    %v60 = vsub.f32 %v29, %v42
    %v61 = vsub.f32 %v30, %v44
    %v62 = vmul.f32 %v32, %v59
    %v63 = vld [vmem:[%s1] sm:$0xff]
    %v64 = vld [vmem:[%s1 + $0x8] sm:$0xf]
    %v65 = vlaneseq
    %v66 = vand.u32 %v65, 127
    %67 = vset.pattern.permute.xlu0 0
    %68 = vperm.xlu0 %67, %v63
    %v69 = vpop.permute.xlu0 %68
    %70 = vset.pattern.permute.xlu0 0
    %71 = vperm.xlu0 %70, %v64
    %v72 = vpop.permute.xlu0 %71
    %vm73 = vcmp.eq.s32.totalorder %v66, %v69
    %vm74 = vcmp.eq.s32.totalorder %v66, %v72
    %v75 = vsel %vm73, 1, 0
    %v76 = vsel %vm74, 1, 0
    %v77 = vcvt.s32.f32 %v75
    %v78 = vcvt.s32.f32 %v76
    %v79 = vmul.f32 %v77, %v60
    %v80 = vmul.f32 %v78, %v61
    %v81 = vsel %vm21, %v79, 0.0
    %82 = vadd.xlane.f32.xlu0 %v81
    %v83 = vpop.xlane.xlu0 %82
    %v84 = vsel %vm25, %v80, 0.0
    %85 = vadd.xlane.f32.xlu0 %v84
    %v86 = vpop.xlane.xlu0 %85
    %v87 = vsub.f32 0.0, %v83
    %v88 = vsub.f32 0.0, %v86
    %vm89 = vcmask 7168
    %v90 = vsel %vm89, %v87, 0.0
    %vm91 = vcmask 3072
    %v92 = vsel %vm91, %v88, 0.0
    %v93 = vadd.f32 %v90, %v92
    %94 = vadd.xlane.f32.xlu0 %v93
    %v95 = vpop.xlane.xlu0 %94
    %v96 = vrot.slane %v95, 4
    %v97 = vadd.f32 %v95, %v96
    %v98 = vrot.slane %v97, 2
    %v99 = vadd.f32 %v97, %v98
    %v100 = vrot.slane %v99, 1
    %v101 = vadd.f32 %v99, %v100
    %s102 = vtos %v101
    %s103 = smul.f32 %s102, 0.25
    %v105 = vrot.slane %v61, 4
    %v107 = vsub.f32 %v60, %v105
    %v108 = vmul.f32 %v62, %v107
    %v110 = vrot.slane %v108, 4
    %v112 = vsel %vm25, %v110, 0.0
    %113 = vadd.xlane.f32.xlu0 %v112
    %v114 = vpop.xlane.xlu0 %113
    %v115 = vrot.slane %v114, 4
    %v116 = vadd.f32 %v114, %v115
    %v117 = vrot.slane %v116, 2
    %v118 = vadd.f32 %v116, %v117
    %v119 = vrot.slane %v118, 1
    %v120 = vadd.f32 %v118, %v119
    %s121 = vtos %v120
    %s122 = smul.f32 %s121, 0.25
    %s123 = scalar_lea.smem [#allocation3], 0
    %124 = sst [smem:[%s123]] %s103
    %s125 = scalar_lea.smem [#allocation5], 0
    %126 = sst [smem:[%s125]] %s122
    // Predicated region
    $region14: #{tpu_custom_call.1} parent=1 // pred_check
      _
    $region15: #{tpu_custom_call.1} parent=1 // pred_check_branch
      %128 = sbr.rel (0) target = $region17
    $region16: #{tpu_custom_call.1} parent=1 // pred_region
      %130 = vsyncadd [#allocation4], 0
      %s132 = sshll.u32 %s3, 4
      %s133 = int_to_ptr.hbm [resolvable:$true] %s132
      %135 = dma.smem_to_hbm [#allocation3], 16, %s133, [#allocation4]
    $region17: #{tpu_custom_call.1} parent=1 // pred_fallthru
      _
    // Predicated region
    $region18: #{tpu_custom_call.1} parent=1 // pred_check
      _
    $region19: #{tpu_custom_call.1} parent=1 // pred_check_branch
      %137 = sbr.rel (0) target = $region21
    $region20: #{tpu_custom_call.1} parent=1 // pred_region
      %139 = vsyncadd [#allocation6], 0
      %s141 = sshll.u32 %s4, 4
      %s142 = int_to_ptr.hbm [resolvable:$true] %s141
      %144 = dma.smem_to_hbm [#allocation5], 16, %s142, [#allocation6]
    $region21: #{tpu_custom_call.1} parent=1 // pred_fallthru
      _
    // Predicated region
    $region22: #{tpu_custom_call.1} parent=1 // pred_check
      _
    $region23: #{tpu_custom_call.1} parent=1 // pred_check_branch
      %146 = sbr.rel (0) target = $region25
    $region24: #{tpu_custom_call.1} parent=1 // pred_region
      %148 = dma.done [#allocation4], 16
    $region25: #{tpu_custom_call.1} parent=1 // pred_fallthru
      _
    // Predicated region
    $region26: #{tpu_custom_call.1} parent=1 // pred_check
      _
    $region27: #{tpu_custom_call.1} parent=1 // pred_check_branch
      %150 = sbr.rel (0) target = $region29
    $region28: #{tpu_custom_call.1} parent=1 // pred_region
      %152 = dma.done [#allocation6], 16
    $region29: #{tpu_custom_call.1} parent=1 // pred_fallthru
      _
    %153 = sfence
    %154 = vsyncpa [#allocation4], 1
    %155 = vsyncpa [#allocation6], 1

</llo_original>
